<compile_context>
chip_gen: v7x
topology: tpu7x:2x2x1
jax: 0.10.0
libtpu: 0.0.40
codegen_flags: <defaults>
</compile_context>

<pallas_src>
import functools
import math

import jax
import jax.numpy as jnp
from jax.experimental import pallas as pl
from jax.experimental.pallas import tpu as pltpu


_LANES = 128


def _bounded_sigmoid(v, lb, ub):
    # sigmoid(v) = 0.5 * (1 + tanh(0.5 * v)) -> single EUP op, rest on VALU.
    return lb + (ub - lb) * (0.5 * (1.0 + jnp.tanh(0.5 * v)))


def _erf_from_shared_exp(z, e, *, nonneg, approx_recip):
    # erf(z) via Abramowitz & Stegun 7.1.26 (max abs error ~1.5e-7), where
    # e = exp(-z*z) is precomputed and shared with the Gaussian term.
    # nonneg=True (mu_lb >= 0) statically removes abs / sign-select.
    a1 = 0.254829592
    a2 = -0.284496736
    a3 = 1.421413741
    a4 = -1.453152027
    a5 = 1.061405429
    p = 0.3275911
    az = z if nonneg else jnp.abs(z)
    denom = 1.0 + p * az
    if approx_recip:
        t = pl.reciprocal(denom, approx=True)
    else:
        t = 1.0 / denom
    poly = ((((a5 * t + a4) * t + a3) * t + a2) * t + a1) * t
    y = 1.0 - poly * e
    return y if nonneg else jnp.where(z >= 0.0, y, -y)


def _folded_normal_mean_kernel(v_mu_ref, v_sigma_ref, out_ref, *,
                               mu_lb, mu_ub, sigma_lb, sigma_ub,
                               mu_nonneg, approx_recip):
    v_mu = v_mu_ref[...]
    v_sigma = v_sigma_ref[...]

    # Bounded-constant reparameterization (IndSmpConstantBoundedFcn).
    mu = _bounded_sigmoid(v_mu, mu_lb, mu_ub)
    sigma = _bounded_sigmoid(v_sigma, sigma_lb, sigma_ub)

    sqrt_2_over_pi = math.sqrt(2.0 / math.pi)
    inv_sqrt_2sig2 = jax.lax.rsqrt(2.0 * sigma * sigma)   # sigma_lb > 0 required
    z = mu * inv_sqrt_2sig2
    e = jnp.exp(-(z * z))                                  # shared exp (single EUP exp)

    gauss_term = sigma * sqrt_2_over_pi * e
    erf_term = mu * _erf_from_shared_exp(z, e, nonneg=mu_nonneg,
                                         approx_recip=approx_recip)
    out_ref[...] = (gauss_term + erf_term).astype(out_ref.dtype)


def folded_normal_matrix_mean(v_mu, v_sigma, *, mu_lb, mu_ub, sigma_lb, sigma_ub,
                              max_block_rows=8192, min_parallel_blocks=2,
                              approx_reciprocal=False):
    """Pallas forward pass of MatrixFoldedNormalProductDistribution.

    v_mu, v_sigma: raw (pre-sigmoid) parameter matrices of shape [n_rows, n_cols].
    Returns the [n_rows, n_cols] matrix of Folded-Normal means (float32).
    """
    n_rows, n_cols = v_mu.shape
    assert v_sigma.shape == (n_rows, n_cols)
    assert sigma_lb > 0.0, "sigma_lb must be > 0 for rsqrt(2*sigma^2) to be finite"

    n = n_rows * n_cols
    r_total = pl.cdiv(n, _LANES)
    pad = r_total * _LANES - n          # 0 on the aligned path (no extra HBM pass)

    # ---- block-row selection --------------------------------------------
    if r_total <= 8:
        # Tiny problem: one full-extent block (no (8,128) constraint when the
        # block equals the full array dims).
        block_rows = r_total
    else:
        # Aim for >= min_parallel_blocks grid steps so v7x's two TensorCores
        # both get work, block rows a multiple of 8 (sublane tiling), capped by
        # max_block_rows for VMEM.  Ragged last block is handled by Pallas.
        target = pl.cdiv(r_total, min_parallel_blocks)
        block_rows = ((target + 7) // 8) * 8
        block_rows = max(8, min(block_rows, max_block_rows))
    grid_rows = pl.cdiv(r_total, block_rows)

    # ---- VMEM budget / input buffering ----------------------------------
    tile_bytes = block_rows * _LANES * 4
    use_buffered = (grid_rows >= 4) and (tile_bytes >= (1 << 20))
    in_bufs = 3 if use_buffered else 2
    vmem_needed = (2 * in_bufs + 2) * tile_bytes           # 2 inputs + 1 output
    vmem_limit = int(min(max(vmem_needed + (4 << 20), 32 << 20), 64 << 20))

    # ---- lane-dense [R, 128] views (zero-cost reshape when pad == 0) -----
    def _to_lane_dense(a):
        flat = a.reshape(-1).astype(jnp.float32)
        if pad:
            flat = jnp.pad(flat, (0, pad))   # only for ragged n (n % 128 != 0)
        return flat.reshape(r_total, _LANES)

    v_mu_ld = _to_lane_dense(v_mu)
    v_sigma_ld = _to_lane_dense(v_sigma)

    kernel = functools.partial(
        _folded_normal_mean_kernel,
        mu_lb=float(mu_lb), mu_ub=float(mu_ub),
        sigma_lb=float(sigma_lb), sigma_ub=float(sigma_ub),
        mu_nonneg=bool(mu_lb >= 0.0),
        approx_recip=bool(approx_reciprocal),
    )

    idx_map = lambda i: (i, 0)
    if use_buffered:
        in_spec = pl.BlockSpec((block_rows, _LANES), idx_map,
                               pipeline_mode=pl.Buffered(3))
    else:
        in_spec = pl.BlockSpec((block_rows, _LANES), idx_map)
    out_spec = pl.BlockSpec((block_rows, _LANES), idx_map)

    n_eff = r_total * _LANES
    cost = pl.CostEstimate(flops=40 * n_eff,
                           transcendentals=5 * n_eff,
                           bytes_accessed=12 * n_eff)

    out_ld = pl.pallas_call(
        kernel,
        out_shape=jax.ShapeDtypeStruct((r_total, _LANES), jnp.float32),
        grid=(grid_rows,),
        in_specs=[in_spec, in_spec],
        out_specs=out_spec,
        compiler_params=pltpu.CompilerParams(
            dimension_semantics=("parallel",),
            vmem_limit_bytes=vmem_limit,
        ),
        cost_estimate=cost,
    )(v_mu_ld, v_sigma_ld)

    if pad:
        return out_ld.reshape(-1)[:n].reshape(n_rows, n_cols)
    return out_ld.reshape(n_rows, n_cols)


def _reference_forward(v_mu, v_sigma, *, mu_lb, mu_ub, sigma_lb, sigma_ub):
    # Pure-JAX reference mirroring the PyTorch forward (uses exact erf).
    mu = mu_lb + (mu_ub - mu_lb) * jax.nn.sigmoid(v_mu)
    sigma = sigma_lb + (sigma_ub - sigma_lb) * jax.nn.sigmoid(v_sigma)
    sqrt_2_over_pi = jnp.sqrt(2.0 / jnp.pi)
    return (sigma * sqrt_2_over_pi * jnp.exp(-mu ** 2 / (2.0 * sigma ** 2))
            + mu * jax.scipy.special.erf(mu / jnp.sqrt(2.0 * sigma ** 2)))


def _inv_sigmoid_frac(iv, lb, ub):
    frac = (iv - lb) / (ub - lb)
    return math.log(frac / (1.0 - frac))


def _make_raw_params(key, shape, iv, lb, ub):
    # Deterministic params: raw v chosen so sigmoid(v) maps to init_value (as in
    # __init__), plus a small perturbation so the output is not constant.
    return (_inv_sigmoid_frac(iv, lb, ub)
            + 0.5 * jax.random.normal(key, shape, dtype=jnp.float32))


if __name__ == "__main__":
    key = jax.random.PRNGKey(0)

    # (shape, mu bounds, sigma bounds) — exercises: aligned single-block,
    # padded ragged multi-block, and aligned multi-block with mu_lb < 0.
    cases = [
        ((32, 16), (0.0, 10.0, 1.0), (0.001, 10.0, 1.0)),     # module defaults
        ((100, 24), (0.0, 10.0, 1.0), (0.001, 10.0, 1.0)),    # ragged (n%128!=0)
        ((64, 64), (-5.0, 5.0, 1.0), (0.001, 10.0, 1.0)),     # signed-mu branch
    ]

    for (shape, (mu_lb, mu_ub, mu_iv), (sigma_lb, sigma_ub, sigma_iv)) in cases:
        key, k_mu, k_sigma = jax.random.split(key, 3)
        v_mu = _make_raw_params(k_mu, shape, mu_iv, mu_lb, mu_ub)
        v_sigma = _make_raw_params(k_sigma, shape, sigma_iv, sigma_lb, sigma_ub)

        out = folded_normal_matrix_mean(
            v_mu, v_sigma,
            mu_lb=mu_lb, mu_ub=mu_ub, sigma_lb=sigma_lb, sigma_ub=sigma_ub,
        )
        out = jax.block_until_ready(out)

        ref = _reference_forward(
            v_mu, v_sigma,
            mu_lb=mu_lb, mu_ub=mu_ub, sigma_lb=sigma_lb, sigma_ub=sigma_ub,
        )

        assert out.shape == shape and out.dtype == jnp.float32
        max_err = float(jnp.max(jnp.abs(out - ref)))
        assert max_err < 1e-4, f"shape {shape}: max abs error {max_err}"

    print("KERNEL_OK")
</pallas_src>

<mosaic_0001>
module attributes {stable_mosaic.version = 11 : i64} {
  func.func @_folded_normal_mean_kernel(%arg0: i32, %arg1: memref<4x128xf32, #tpu.memory_space<vmem>>, %arg2: memref<4x128xf32, #tpu.memory_space<vmem>>, %arg3: memref<4x128xf32, #tpu.memory_space<vmem>>) attributes {dimension_semantics = [#tpu.dimension_semantics<parallel>], iteration_bounds = array<i64: 1>, scalar_prefetch = 0 : i64, scratch_operands = 0 : i64, tpu.core_type = #tpu.core_type<tc>, window_params = [{transform_indices = @transform_0, window_bounds = array<i64: 4, 128>}, {transform_indices = @transform_1, window_bounds = array<i64: 4, 128>}, {transform_indices = @transform_2, window_bounds = array<i64: 4, 128>}]} {
    %c0 = arith.constant 0 : index
    %c0_0 = arith.constant 0 : index
    %0 = vector.load %arg1[%c0, %c0_0] : memref<4x128xf32, #tpu.memory_space<vmem>>, vector<4x128xf32>
    %c0_1 = arith.constant 0 : index
    %c0_2 = arith.constant 0 : index
    %1 = vector.load %arg2[%c0_1, %c0_2] : memref<4x128xf32, #tpu.memory_space<vmem>>, vector<4x128xf32>
    %cst = arith.constant 5.000000e-01 : f32
    %2 = vector.broadcast %cst : f32 to vector<4x128xf32>
    %3 = arith.mulf %2, %0 : vector<4x128xf32>
    %4 = math.tanh %3 : vector<4x128xf32>
    %cst_3 = arith.constant 1.000000e+00 : f32
    %5 = vector.broadcast %cst_3 : f32 to vector<4x128xf32>
    %6 = arith.addf %5, %4 : vector<4x128xf32>
    %cst_4 = arith.constant 5.000000e-01 : f32
    %7 = vector.broadcast %cst_4 : f32 to vector<4x128xf32>
    %8 = arith.mulf %7, %6 : vector<4x128xf32>
    %cst_5 = arith.constant 1.000000e+01 : f32
    %9 = vector.broadcast %cst_5 : f32 to vector<4x128xf32>
    %10 = arith.mulf %9, %8 : vector<4x128xf32>
    %cst_6 = arith.constant 0.000000e+00 : f32
    %11 = vector.broadcast %cst_6 : f32 to vector<4x128xf32>
    %12 = arith.addf %11, %10 : vector<4x128xf32>
    %cst_7 = arith.constant 5.000000e-01 : f32
    %13 = vector.broadcast %cst_7 : f32 to vector<4x128xf32>
    %14 = arith.mulf %13, %1 : vector<4x128xf32>
    %15 = math.tanh %14 : vector<4x128xf32>
    %cst_8 = arith.constant 1.000000e+00 : f32
    %16 = vector.broadcast %cst_8 : f32 to vector<4x128xf32>
    %17 = arith.addf %16, %15 : vector<4x128xf32>
    %cst_9 = arith.constant 5.000000e-01 : f32
    %18 = vector.broadcast %cst_9 : f32 to vector<4x128xf32>
    %19 = arith.mulf %18, %17 : vector<4x128xf32>
    %cst_10 = arith.constant 9.99899959 : f32
    %20 = vector.broadcast %cst_10 : f32 to vector<4x128xf32>
    %21 = arith.mulf %20, %19 : vector<4x128xf32>
    %cst_11 = arith.constant 1.000000e-03 : f32
    %22 = vector.broadcast %cst_11 : f32 to vector<4x128xf32>
    %23 = arith.addf %22, %21 : vector<4x128xf32>
    %cst_12 = arith.constant 2.000000e+00 : f32
    %24 = vector.broadcast %cst_12 : f32 to vector<4x128xf32>
    %25 = arith.mulf %24, %23 : vector<4x128xf32>
    %26 = arith.mulf %25, %23 : vector<4x128xf32>
    %27 = math.rsqrt %26 : vector<4x128xf32>
    %28 = arith.mulf %12, %27 : vector<4x128xf32>
    %29 = arith.mulf %28, %28 : vector<4x128xf32>
    %cst_13 = arith.constant 0.000000e+00 : f32
    %30 = vector.broadcast %cst_13 : f32 to vector<4x128xf32>
    %31 = arith.subf %30, %29 : vector<4x128xf32>
    %32 = math.exp %31 : vector<4x128xf32>
    %cst_14 = arith.constant 0.797884583 : f32
    %33 = vector.broadcast %cst_14 : f32 to vector<4x128xf32>
    %34 = arith.mulf %23, %33 : vector<4x128xf32>
    %35 = arith.mulf %34, %32 : vector<4x128xf32>
    %cst_15 = arith.constant 0.327591091 : f32
    %36 = vector.broadcast %cst_15 : f32 to vector<4x128xf32>
    %37 = arith.mulf %36, %28 : vector<4x128xf32>
    %cst_16 = arith.constant 1.000000e+00 : f32
    %38 = vector.broadcast %cst_16 : f32 to vector<4x128xf32>
    %39 = arith.addf %38, %37 : vector<4x128xf32>
    %cst_17 = arith.constant 1.000000e+00 : f32
    %40 = vector.broadcast %cst_17 : f32 to vector<4x128xf32>
    %41 = arith.divf %40, %39 : vector<4x128xf32>
    %cst_18 = arith.constant 1.06140542 : f32
    %42 = vector.broadcast %cst_18 : f32 to vector<4x128xf32>
    %43 = arith.mulf %42, %41 : vector<4x128xf32>
    %cst_19 = arith.constant -1.45315206 : f32
    %44 = vector.broadcast %cst_19 : f32 to vector<4x128xf32>
    %45 = arith.addf %43, %44 : vector<4x128xf32>
    %46 = arith.mulf %45, %41 : vector<4x128xf32>
    %cst_20 = arith.constant 1.42141378 : f32
    %47 = vector.broadcast %cst_20 : f32 to vector<4x128xf32>
    %48 = arith.addf %46, %47 : vector<4x128xf32>
    %49 = arith.mulf %48, %41 : vector<4x128xf32>
    %cst_21 = arith.constant -0.284496725 : f32
    %50 = vector.broadcast %cst_21 : f32 to vector<4x128xf32>
    %51 = arith.addf %49, %50 : vector<4x128xf32>
    %52 = arith.mulf %51, %41 : vector<4x128xf32>
    %cst_22 = arith.constant 0.254829586 : f32
    %53 = vector.broadcast %cst_22 : f32 to vector<4x128xf32>
    %54 = arith.addf %52, %53 : vector<4x128xf32>
    %55 = arith.mulf %54, %41 : vector<4x128xf32>
    %56 = arith.mulf %55, %32 : vector<4x128xf32>
    %cst_23 = arith.constant 1.000000e+00 : f32
    %57 = vector.broadcast %cst_23 : f32 to vector<4x128xf32>
    %58 = arith.subf %57, %56 : vector<4x128xf32>
    %59 = arith.mulf %12, %58 : vector<4x128xf32>
    %60 = arith.addf %35, %59 : vector<4x128xf32>
    %c0_24 = arith.constant 0 : index
    %c0_25 = arith.constant 0 : index
    %61 = vector.load %arg3[%c0_24, %c0_25] : memref<4x128xf32, #tpu.memory_space<vmem>>, vector<4x128xf32>
    tpu.vector_store %arg3[%c0_24, %c0_25], %60 {strides = array<i32>} : memref<4x128xf32, #tpu.memory_space<vmem>>, vector<4x128xf32>,
    return
  }
  func.func @transform_0(%arg0: i32) -> (i32, i32) {
    %c0_i32 = arith.constant 0 : i32
    %c0_i32_0 = arith.constant 0 : i32
    return %arg0, %c0_i32 : i32, i32
  }
  func.func @transform_1(%arg0: i32) -> (i32, i32) {
    %c0_i32 = arith.constant 0 : i32
    %c0_i32_0 = arith.constant 0 : i32
    return %arg0, %c0_i32 : i32, i32
  }
  func.func @transform_2(%arg0: i32) -> (i32, i32) {
    %c0_i32 = arith.constant 0 : i32
    %c0_i32_0 = arith.constant 0 : i32
    return %arg0, %c0_i32 : i32, i32
  }
}

</mosaic_0001>

<llo_original>
// kernel: tpu_custom_call.1
$region0: #{tpu_custom_call.1}
  #allocation0 [shape = 'u32[]', space=smem, size = 0x4, offset = 0x4, fixed_abs, tag = 'smem constant byte address 0x4 - core index']
  #allocation1 [shape = 'u32[144,128]{1,0:T(1,128)}', space=vmem, size = 0x12000, scoped, tag = 'internal scratch']
  %s0 = inlined_call_operand.hbm [shape: f32[4,128], index: 0, kind: input, shape index: {}]
  %s1 = inlined_call_operand.hbm [shape: f32[4,128], index: 1, kind: input, shape index: {}]
  %s2 = inlined_call_operand.hbm [shape: f32[4,128], index: 2, kind: output, shape index: {}]
  %s3 = sld [smem:[#allocation0]]
  $region26: #{tpu_custom_call.1} parent=0
    _
  %s5 = ssub.s32 1, %s3
  %s6 = scalar_select 0, %s5, %s3
  $region1: #{tpu_custom_call.1} parent=0
    #allocation2 [shape = 'u8[2048]{0}', space=vmem, size = 0x800, scoped, tag = 'input window, operand 0, single buffered']
    #allocation3 [shape = 's32[1]{0}', space=sflag, size = 0x4, scoped, tag = 'scoped memory for tpu_custom_call.1']
    #allocation4 [shape = 's32[1]{0}', space=sflag, size = 0x4, scoped, tag = 'scoped memory for tpu_custom_call.1']
    #allocation5 [shape = 'u8[2048]{0}', space=vmem, size = 0x800, scoped, tag = 'input window, operand 1, single buffered']
    #allocation6 [shape = 's32[1]{0}', space=sflag, size = 0x4, scoped, tag = 'scoped memory for tpu_custom_call.1']
    #allocation7 [shape = 'u8[2048]{0}', space=vmem, size = 0x800, scoped, tag = 'output window, operand 0, single buffered']
    %7 = vsyncpa [#allocation3], 0
    %8 = vsyncpa [#allocation6], 0
    %9 = vsyncpa [#allocation4], 0
    // Predicated region
    $region2: #{tpu_custom_call.1} parent=1 // pred_check
      _
    $region3: #{tpu_custom_call.1} parent=1 // pred_check_branch
      %11 = sbr.rel (0) target = $region5
    $region4: #{tpu_custom_call.1} parent=1 // pred_region
      %s13 = ssub.s32 64, 64
      %14 = vsyncadd [#allocation3], %s13
      %s16 = sshll.u32 [#allocation2], 4
      %s17 = int_to_ptr.vmem [resolvable:$true] %s16
      %19 = dma.hbm_to_vmem [thread:$0]  %s0, 64, %s17, [#allocation3]
    $region5: #{tpu_custom_call.1} parent=1 // pred_fallthru
      _
    // Predicated region
    $region6: #{tpu_custom_call.1} parent=1 // pred_check
      _
    $region7: #{tpu_custom_call.1} parent=1 // pred_check_branch
      %21 = sbr.rel (0) target = $region9
    $region8: #{tpu_custom_call.1} parent=1 // pred_region
      %s23 = ssub.s32 64, 64
      %24 = vsyncadd [#allocation6], %s23
      %s26 = sshll.u32 [#allocation5], 4
      %s27 = int_to_ptr.vmem [resolvable:$true] %s26
      %29 = dma.hbm_to_vmem [thread:$0]  %s1, 64, %s27, [#allocation6]
    $region9: #{tpu_custom_call.1} parent=1 // pred_fallthru
      _
    // Predicated region
    $region10: #{tpu_custom_call.1} parent=1 // pred_check
      _
    $region11: #{tpu_custom_call.1} parent=1 // pred_check_branch
      %31 = sbr.rel (0) target = $region13
    $region12: #{tpu_custom_call.1} parent=1 // pred_region
      %32 = dma.done [#allocation3], 64
    $region13: #{tpu_custom_call.1} parent=1 // pred_fallthru
      _
    // Predicated region
    $region14: #{tpu_custom_call.1} parent=1 // pred_check
      _
    $region15: #{tpu_custom_call.1} parent=1 // pred_check_branch
      %34 = sbr.rel (0) target = $region17
    $region16: #{tpu_custom_call.1} parent=1 // pred_region
      %35 = dma.done [#allocation6], 64
    $region17: #{tpu_custom_call.1} parent=1 // pred_fallthru
      _
    %v36 = vld [vmem:[#allocation2] sm:$0xf]
    %v37 = vld [vmem:[#allocation5] sm:$0xf]
    %v38 = vmul.f32 %v36, 0.5
    %v39 = vtanh.pop %v38
    %v40 = vadd.f32 %v39, 1.0
    %v41 = vmul.f32 %v40, 0.5
    %v42 = vmul.f32 %v41, 10.0
    %v43 = vadd.f32 %v42, 0.0
    %v44 = vmul.f32 %v37, 0.5
    %v45 = vtanh.pop %v44
    %v46 = vadd.f32 %v45, 1.0
    %v47 = vmul.f32 %v46, 0.5
    %v48 = vmul.f32 %v47, 9.999
    %v49 = vadd.f32 %v48, 0.001
    %v50 = vmul.f32 %v49, 2.0
    %v51 = vmul.f32 %v50, %v49
    %v52 = vrsqrt.pop %v51
    %v53 = vmul.f32 %v43, %v52
    %v54 = vmul.f32 %v53, %v53
    %v55 = vsub.f32 0.0, %v54
    %v56 = vmul.f32 %v55, 1.442695
    %v57 = vpow.pop %v56
    %v58 = vmul.f32 %v49, 0.7978846
    %v59 = vmul.f32 %v58, %v57
    %v60 = vmul.f32 %v53, 0.3275911
    %v61 = vadd.f32 %v60, 1.0
    %v62 = vrcp.pop %v61
    %v63 = vmul.f32 1.0, %v62
    %v64 = vmul.f32 %v63, 1.0614054
    %v65 = vadd.f32 %v64, -1.4531521
    %v66 = vmul.f32 %v65, %v63
    %v67 = vadd.f32 %v66, 1.4214138
    %v68 = vmul.f32 %v67, %v63
    %v69 = vadd.f32 %v68, -0.28449672
    %v70 = vmul.f32 %v69, %v63
    %v71 = vadd.f32 %v70, 0.2548296
    %v72 = vmul.f32 %v71, %v63
    %v73 = vmul.f32 %v72, %v57
    %v74 = vsub.f32 1.0, %v73
    %v75 = vmul.f32 %v43, %v74
    %v76 = vadd.f32 %v59, %v75
    %77 = vst [vmem:[#allocation7] sm:$0xf] %v76
    // Predicated region
    $region18: #{tpu_custom_call.1} parent=1 // pred_check
      _
    $region19: #{tpu_custom_call.1} parent=1 // pred_check_branch
      %79 = sbr.rel (0) target = $region21
    $region20: #{tpu_custom_call.1} parent=1 // pred_region
      %s81 = ssub.s32 64, 64
      %82 = vsyncadd [#allocation4], %s81
      %s84 = sshll.u32 [#allocation7], 4
      %s85 = int_to_ptr.vmem [resolvable:$true] %s84
      %87 = dma.vmem_to_hbm [thread:$0]  %s85, 64, %s2, [#allocation4]
    $region21: #{tpu_custom_call.1} parent=1 // pred_fallthru
      _
    // Predicated region
    $region22: #{tpu_custom_call.1} parent=1 // pred_check
      _
    $region23: #{tpu_custom_call.1} parent=1 // pred_check_branch
      %89 = sbr.rel (0) target = $region25
    $region24: #{tpu_custom_call.1} parent=1 // pred_region
      %90 = dma.done [#allocation4], 64
    $region25: #{tpu_custom_call.1} parent=1 // pred_fallthru
      _
    %91 = vsyncpa [#allocation3], 1
    %92 = vsyncpa [#allocation6], 1
    %93 = vsyncpa [#allocation4], 1

</llo_original>
